<compile_context>
chip_gen: v7x
topology: tpu7x:2x2x1
jax: 0.10.0
libtpu: 0.0.40
codegen_flags: <defaults>
</compile_context>

<pallas_src>
import functools

import jax
import jax.numpy as jnp
from jax.experimental import pallas as pl
from jax.experimental.pallas import tpu as pltpu

_EPS = 1e-5


def _layer_kernel(*refs, apply_dropout, add_residual):
    """Fused:  y = [residual +] Dropout(ReLU(BN(x @ w + b)))  for one feature tile."""
    it = iter(refs)
    x_ref = next(it)                                   # (N, K)   full batch / full K
    w_ref = next(it)                                   # (K, TN)  weight slab
    s_ref = next(it)                                   # (3, TN)  rows: bias, gamma, beta
    mask_ref = next(it) if apply_dropout else None     # (N, TN)  pre-scaled keep mask
    res_ref = next(it) if add_residual else None       # (N, TN)  residual tile
    out_ref = next(it)                                 # (N, TN)

    # MXU matmul in the operands' native dtype, f32 accumulation.
    y = jnp.dot(x_ref[...], w_ref[...], preferred_element_type=jnp.float32)

    s = s_ref[...].astype(jnp.float32)
    y = y + s[0:1, :]                                  # bias

    # BatchNorm1d, training-mode batch statistics (biased variance).
    mean = jnp.mean(y, axis=0, keepdims=True)
    centered = y - mean
    var = jnp.mean(centered * centered, axis=0, keepdims=True)
    y = centered * jax.lax.rsqrt(var + _EPS)
    y = y * s[1:2, :] + s[2:3, :]                      # gamma, beta

    y = jnp.maximum(y, 0.0)                            # ReLU

    if apply_dropout:
        # Mask is already scaled by 1/(1-p): one VPU multiply per element.
        y = y * mask_ref[...].astype(jnp.float32)

    if add_residual:
        y = y + res_ref[...].astype(jnp.float32)

    out_ref[...] = y.astype(out_ref.dtype)


def _pick_block_n(f_out):
    """Biggest lane-aligned output-feature tile (256 matches v6e/v7x MXU width)."""
    for cand in (256, 128):
        if f_out % cand == 0:
            return cand
    return f_out  # not lane-aligned: single full-width block


def _fused_layer(x, w, scales, mask=None, residual=None, *, out_dtype=None):
    """One Linear->BN->ReLU->Dropout [->+residual] layer as a tiled pallas_call."""
    n, k = x.shape
    kw, f_out = w.shape
    assert k == kw, "weight must be stored as (F_in, F_out)"
    out_dtype = out_dtype or x.dtype

    block_n = _pick_block_n(f_out)
    grid = (f_out // block_n,)

    in_specs = [
        pl.BlockSpec((n, k), lambda j: (0, 0)),         # x: resident across tiles
        pl.BlockSpec((k, block_n), lambda j: (0, j)),   # weight slab (pipelined)
        pl.BlockSpec((3, block_n), lambda j: (0, j)),   # packed bias/gamma/beta
    ]
    operands = [x, w, scales]
    if mask is not None:
        in_specs.append(pl.BlockSpec((n, block_n), lambda j: (0, j)))
        operands.append(mask)
    if residual is not None:
        in_specs.append(pl.BlockSpec((n, block_n), lambda j: (0, j)))
        operands.append(residual)

    # Size scoped VMEM from the actual working set (x + slabs, x2 for the
    # double-buffered pipeline), clamped to what fits every TPU generation.
    itemsize = jnp.dtype(x.dtype).itemsize
    n_act_streams = 2 + (mask is not None) + (residual is not None)  # out + extras
    est = 2 * (n * k * itemsize
               + k * block_n * itemsize
               + 3 * block_n * 4
               + n_act_streams * n * block_n * itemsize)
    vmem_limit = int(min(max(2 * est, 32 * 1024 * 1024), 64 * 1024 * 1024))

    kernel = functools.partial(_layer_kernel,
                               apply_dropout=mask is not None,
                               add_residual=residual is not None)

    return pl.pallas_call(
        kernel,
        grid=grid,
        in_specs=in_specs,
        out_specs=pl.BlockSpec((n, block_n), lambda j: (0, j)),
        out_shape=jax.ShapeDtypeStruct((n, f_out), out_dtype),
        compiler_params=pltpu.CompilerParams(
            dimension_semantics=("parallel",),
            vmem_limit_bytes=vmem_limit,
        ),
    )(*operands)


def linear_block(x, params, *, p_dropout=0.5, training=True, rng_key=None):
    """Forward of the Martinez residual block (two fused pallas_calls).

    params: dict with "w1"/"w2" of shape (F_in, F_out) (== torch W.T) and
            "scale1"/"scale2" of shape (3, F) packing [bias, gamma, beta].
    """
    n, f = x.shape
    use_dropout = training and p_dropout > 0.0
    mask1 = mask2 = None
    if use_dropout:
        if p_dropout >= 1.0:
            raise ValueError("p_dropout must be < 1.0")
        if rng_key is None:
            rng_key = jax.random.PRNGKey(0)
        k1, k2 = jax.random.split(rng_key)
        inv_keep = 1.0 / (1.0 - p_dropout)
        # Inverted-dropout keep masks, pre-scaled by 1/(1-p).
        mask1 = jax.random.bernoulli(k1, 1.0 - p_dropout, (n, f)).astype(x.dtype) * inv_keep
        mask2 = jax.random.bernoulli(k2, 1.0 - p_dropout, (n, f)).astype(x.dtype) * inv_keep

    y = _fused_layer(x, params["w1"], params["scale1"], mask=mask1)
    out = _fused_layer(y, params["w2"], params["scale2"], mask=mask2, residual=x)
    return out


def _reference_no_dropout(x, params):
    """Pure-JAX reference (training-mode BN, dropout disabled)."""
    def bn(y, gamma, beta):
        mean = jnp.mean(y, axis=0, keepdims=True)
        var = jnp.mean((y - mean) ** 2, axis=0, keepdims=True)
        return (y - mean) / jnp.sqrt(var + _EPS) * gamma + beta

    b1, g1, be1 = params["scale1"]
    b2, g2, be2 = params["scale2"]
    y = x @ params["w1"] + b1
    y = jnp.maximum(bn(y, g1, be1), 0.0)
    y = y @ params["w2"] + b2
    y = jnp.maximum(bn(y, g2, be2), 0.0)
    return x + y


def init_params(key, linear_size):
    """Torch-default init (uniform +-1/sqrt(fan_in)); weights stored pre-transposed."""
    f = linear_size
    bound = 1.0 / jnp.sqrt(jnp.float32(f))
    k1, k2, k3, k4 = jax.random.split(key, 4)
    w1 = jax.random.uniform(k1, (f, f), jnp.float32, -bound, bound)   # (F_in, F_out)
    b1 = jax.random.uniform(k2, (f,), jnp.float32, -bound, bound)
    w2 = jax.random.uniform(k3, (f, f), jnp.float32, -bound, bound)
    b2 = jax.random.uniform(k4, (f,), jnp.float32, -bound, bound)
    ones = jnp.ones((f,), jnp.float32)
    zeros = jnp.zeros((f,), jnp.float32)
    return {
        "w1": w1,
        "scale1": jnp.stack([b1, ones, zeros]),   # [bias, gamma, beta]
        "w2": w2,
        "scale2": jnp.stack([b2, ones, zeros]),
    }


if __name__ == "__main__":
    batch = 64
    linear_size = 512   # -> feature tile 256, grid=(2,) per layer

    key = jax.random.PRNGKey(0)
    kx, kp, kd = jax.random.split(key, 3)
    x = jax.random.normal(kx, (batch, linear_size), dtype=jnp.float32)
    params = init_params(kp, linear_size)

    # 1) deterministic path (dropout off) vs. pure-JAX reference
    out_nodrop = jax.block_until_ready(linear_block(x, params, training=False))
    ref = _reference_no_dropout(x, params)
    assert jnp.allclose(out_nodrop, ref, atol=1e-3, rtol=1e-3), \
        "Pallas kernel mismatch vs reference"

    # 2) full training-mode forward (batch-stat BN + inverted dropout)
    out = jax.block_until_ready(
        linear_block(x, params, p_dropout=0.5, training=True, rng_key=kd))
    assert out.shape == (batch, linear_size)
    assert bool(jnp.all(jnp.isfinite(out)))

    print("KERNEL_OK")
</pallas_src>

<mosaic_0001>
module attributes {stable_mosaic.version = 11 : i64} {
  func.func @_layer_kernel(%arg0: i32, %arg1: memref<64x512xf32, #tpu.memory_space<vmem>>, %arg2: memref<512x256xf32, #tpu.memory_space<vmem>>, %arg3: memref<3x256xf32, #tpu.memory_space<vmem>>, %arg4: memref<64x256xf32, #tpu.memory_space<vmem>>) attributes {dimension_semantics = [#tpu.dimension_semantics<parallel>], iteration_bounds = array<i64: 2>, scalar_prefetch = 0 : i64, scratch_operands = 0 : i64, tpu.core_type = #tpu.core_type<tc>, window_params = [{pipeline_mode = #tpu.pipeline_mode<synchronous>, transform_indices = @transform_0, window_bounds = array<i64: 64, 512>}, {transform_indices = @transform_1, window_bounds = array<i64: 512, 256>}, {transform_indices = @transform_2, window_bounds = array<i64: 3, 256>}, {transform_indices = @transform_3, window_bounds = array<i64: 64, 256>}]} {
    %c0 = arith.constant 0 : index
    %c0_0 = arith.constant 0 : index
    %0 = vector.load %arg1[%c0, %c0_0] : memref<64x512xf32, #tpu.memory_space<vmem>>, vector<64x512xf32>
    %c0_1 = arith.constant 0 : index
    %c0_2 = arith.constant 0 : index
    %1 = vector.load %arg2[%c0_1, %c0_2] : memref<512x256xf32, #tpu.memory_space<vmem>>, vector<512x256xf32>
    %cst = arith.constant dense<0.000000e+00> : vector<64x256xf32>
    %2 = tpu.matmul %0, %1, %cst {dimension_numbers = #tpu.dot_dimension_numbers<[1], [0], [0], [1], [0, 0, 1, 1], [], []>} : vector<64x512xf32>, vector<512x256xf32>, vector<64x256xf32> -> vector<64x256xf32>
    %c0_3 = arith.constant 0 : index
    %c0_4 = arith.constant 0 : index
    %3 = vector.load %arg3[%c0_3, %c0_4] : memref<3x256xf32, #tpu.memory_space<vmem>>, vector<3x256xf32>
    %4 = vector.extract_strided_slice %3 {offsets = [0, 0], sizes = [1, 256], strides = [1, 1]} : vector<3x256xf32> to vector<1x256xf32>
    %5 = vector.broadcast %4 : vector<1x256xf32> to vector<64x256xf32>
    %6 = arith.addf %2, %5 : vector<64x256xf32>
    %cst_5 = arith.constant dense<0.000000e+00> : vector<256xf32>
    %7 = vector.multi_reduction <add>, %6, %cst_5 [0] : vector<64x256xf32> to vector<256xf32>
    %8 = vector.shape_cast %7 : vector<256xf32> to vector<1x256xf32>
    %cst_6 = arith.constant 6.400000e+01 : f32
    %9 = vector.broadcast %cst_6 : f32 to vector<1x256xf32>
    %10 = arith.divf %8, %9 : vector<1x256xf32>
    %11 = vector.broadcast %10 : vector<1x256xf32> to vector<64x256xf32>
    %12 = arith.subf %6, %11 : vector<64x256xf32>
    %13 = arith.mulf %12, %12 : vector<64x256xf32>
    %cst_7 = arith.constant dense<0.000000e+00> : vector<256xf32>
    %14 = vector.multi_reduction <add>, %13, %cst_7 [0] : vector<64x256xf32> to vector<256xf32>
    %15 = vector.shape_cast %14 : vector<256xf32> to vector<1x256xf32>
    %cst_8 = arith.constant 6.400000e+01 : f32
    %16 = vector.broadcast %cst_8 : f32 to vector<1x256xf32>
    %17 = arith.divf %15, %16 : vector<1x256xf32>
    %cst_9 = arith.constant 9.99999974E-6 : f32
    %18 = vector.broadcast %cst_9 : f32 to vector<1x256xf32>
    %19 = arith.addf %17, %18 : vector<1x256xf32>
    %20 = math.rsqrt %19 : vector<1x256xf32>
    %21 = vector.broadcast %20 : vector<1x256xf32> to vector<64x256xf32>
    %22 = arith.mulf %12, %21 : vector<64x256xf32>
    %23 = vector.extract_strided_slice %3 {offsets = [1, 0], sizes = [1, 256], strides = [1, 1]} : vector<3x256xf32> to vector<1x256xf32>
    %24 = vector.broadcast %23 : vector<1x256xf32> to vector<64x256xf32>
    %25 = arith.mulf %22, %24 : vector<64x256xf32>
    %26 = vector.extract_strided_slice %3 {offsets = [2, 0], sizes = [1, 256], strides = [1, 1]} : vector<3x256xf32> to vector<1x256xf32>
    %27 = vector.broadcast %26 : vector<1x256xf32> to vector<64x256xf32>
    %28 = arith.addf %25, %27 : vector<64x256xf32>
    %cst_10 = arith.constant 0.000000e+00 : f32
    %29 = vector.broadcast %cst_10 : f32 to vector<64x256xf32>
    %30 = arith.maximumf %28, %29 : vector<64x256xf32>
    %c0_11 = arith.constant 0 : index
    %c0_12 = arith.constant 0 : index
    %31 = vector.load %arg4[%c0_11, %c0_12] : memref<64x256xf32, #tpu.memory_space<vmem>>, vector<64x256xf32>
    tpu.vector_store %arg4[%c0_11, %c0_12], %30 {strides = array<i32>} : memref<64x256xf32, #tpu.memory_space<vmem>>, vector<64x256xf32>,
    return
  }
  func.func @transform_0(%arg0: i32) -> (i32, i32) {
    %c0_i32 = arith.constant 0 : i32
    %c0_i32_0 = arith.constant 0 : i32
    %c0_i32_1 = arith.constant 0 : i32
    return %c0_i32, %c0_i32_0 : i32, i32
  }
  func.func @transform_1(%arg0: i32) -> (i32, i32) {
    %c0_i32 = arith.constant 0 : i32
    %c0_i32_0 = arith.constant 0 : i32
    return %c0_i32, %arg0 : i32, i32
  }
  func.func @transform_2(%arg0: i32) -> (i32, i32) {
    %c0_i32 = arith.constant 0 : i32
    %c0_i32_0 = arith.constant 0 : i32
    return %c0_i32, %arg0 : i32, i32
  }
  func.func @transform_3(%arg0: i32) -> (i32, i32) {
    %c0_i32 = arith.constant 0 : i32
    %c0_i32_0 = arith.constant 0 : i32
    return %c0_i32, %arg0 : i32, i32
  }
}

</mosaic_0001>

<llo_original>
// kernel: tpu_custom_call.1
$region0: #{tpu_custom_call.1}
  #allocation0 [shape = 'u32[]', space=smem, size = 0x4, offset = 0x4, fixed_abs, tag = 'smem constant byte address 0x4 - core index']
  #allocation1 [shape = 'u32[144,128]{1,0:T(1,128)}', space=vmem, size = 0x12000, scoped, tag = 'internal scratch']
  %s0 = inlined_call_operand.hbm [shape: f32[64,512], index: 0, kind: input, shape index: {}]
  %s1 = inlined_call_operand.hbm [shape: f32[512,512], index: 1, kind: input, shape index: {}]
  %s2 = inlined_call_operand.hbm [shape: f32[3,512], index: 2, kind: input, shape index: {}]
  %s3 = inlined_call_operand.hbm [shape: f32[64,512], index: 3, kind: output, shape index: {}]
  %s4 = sld [smem:[#allocation0]]
  $region57: #{tpu_custom_call.1} parent=0
    _
  %s6 = ssub.s32 1, %s4
  %s7 = scalar_select 0, %s6, %s4
  $region1: #{tpu_custom_call.1} parent=0
    #allocation2 [shape = 'u8[131072]{0}', space=vmem, size = 0x20000, scoped, tag = 'input window, operand 0, single buffered']
    #allocation3 [shape = 's32[2]{0}', space=sflag, size = 0x8, scoped, tag = 'scoped memory for tpu_custom_call.1']
    #allocation4 [shape = 's32[2]{0}', space=sflag, size = 0x8, scoped, tag = 'scoped memory for tpu_custom_call.1']
    #allocation5 [shape = 'u8[1048576]{0}', space=vmem, size = 0x100000, scoped, tag = 'input window, operand 1']
    #allocation6 [shape = 's32[2]{0}', space=sflag, size = 0x8, scoped, tag = 'scoped memory for tpu_custom_call.1']
    #allocation7 [shape = 'u8[8192]{0}', space=vmem, size = 0x2000, scoped, tag = 'input window, operand 2']
    #allocation8 [shape = 'u8[131072]{0}', space=vmem, size = 0x20000, scoped, tag = 'output window, operand 0']
    %8 = vsyncpa [#allocation3], 0
    %9 = vsyncpa [#allocation6], 0
    %s10 = scalar_lea.sflag [#allocation6], 1
    %11 = vsyncpa %s10, 0
    %12 = vsyncpa [#allocation4], 0
    %s13 = scalar_lea.sflag [#allocation4], 1
    %14 = vsyncpa %s13, 0
    loop: start=0, step=1, limit=4
    $region2: #{tpu_custom_call.1} parent=1 // loop_pre_header
      _
    $region3: #{tpu_custom_call.1} parent=1 // loop_header
      %s16 = sphi 0, %s20
      %p17 = scmp.ge.s32.totalorder %s16, 4
      %s24 = sphi 0, %s24
      %s26 = sphi 0, %s24
      %s27 = sphi 0, %s26
      %s41 = sphi 0, %s27
      %s47 = sphi 0, %s49
      %s50 = sphi 0, %s47
      %s51 = sphi 0, %s50
      %s67 = sphi 0, %s51
      %s73 = sphi 0, %s75
      %s76 = sphi 0, %s73
      %s77 = sphi 0, %s76
      %s93 = sphi 0, %s77
      %s99 = sphi 0, %s101
      %s102 = sphi 0, %s99
      %s103 = sphi 0, %s102
      %s119 = sphi 0, %s103
    $region4: #{tpu_custom_call.1} parent=1 // loop_header_branch
      %19 = sbr.rel (%p17) target = $region8
    $region5: #{tpu_custom_call.1} parent=1 // loop_body
      %s21 = ssub.s32 %s16, 1
      %s22 = ssub.s32 %s16, 2
      %s23 = sadd.s32 %s16, 1
      %s25 = sadd.s32 %s24, 1
      %p28 = scmp.eq.s32.totalorder %s16, 1
      %p29 = scmp.ne.s32.totalorder %s24, %s26
      %p30 = scmp.eq.s32.totalorder %s16, 0
      %p31 = por %p29, %p30
      %p32 = scmp.ne.s32.totalorder %s24, %s26
      %p33 = scmp.eq.s32.totalorder %s21, 1
      %p34 = por %p32, %p33
      %p35 = scmp.ne.s32.totalorder %s26, %s27
      %p36 = scmp.eq.s32.totalorder %s21, 0
      %p37 = por %p35, %p36
      %p38 = scmp.ne.s32.totalorder %s26, %s27
      %p39 = scmp.eq.s32.totalorder %s22, 1
      %p40 = por %p38, %p39
      %p42 = scmp.ne.s32.totalorder %s27, %s41
      %p43 = scmp.eq.s32.totalorder %s22, 0
      %p44 = por %p42, %p43
      %s45 = ssub.s32 %s16, %s23
      %p46 = scmp.eq.s32.totalorder %s45, 0
      %s48 = sadd.s32 %s47, 1
      %s49 = scalar_select %p46, %s47, %s48
      %p52 = pneg %p46
      %p53 = scmp.eq.s32.totalorder %s16, 1
      %p54 = por %p52, %p53
      %p55 = scmp.ne.s32.totalorder %s47, %s50
      %p56 = scmp.eq.s32.totalorder %s16, 0
      %p57 = por %p55, %p56
      %p58 = scmp.ne.s32.totalorder %s47, %s50
      %p59 = scmp.eq.s32.totalorder %s21, 1
      %p60 = por %p58, %p59
      %p61 = scmp.ne.s32.totalorder %s50, %s51
      %p62 = scmp.eq.s32.totalorder %s21, 0
      %p63 = por %p61, %p62
      %p64 = scmp.ne.s32.totalorder %s50, %s51
      %p65 = scmp.eq.s32.totalorder %s22, 1
      %p66 = por %p64, %p65
      %p68 = scmp.ne.s32.totalorder %s51, %s67
      %p69 = scmp.eq.s32.totalorder %s22, 0
      %p70 = por %p68, %p69
      %s71 = ssub.s32 %s16, %s23
      %p72 = scmp.eq.s32.totalorder %s71, 0
      %s74 = sadd.s32 %s73, 1
      %s75 = scalar_select %p72, %s73, %s74
      %p78 = pneg %p72
      %p79 = scmp.eq.s32.totalorder %s16, 1
      %p80 = por %p78, %p79
      %p81 = scmp.ne.s32.totalorder %s73, %s76
      %p82 = scmp.eq.s32.totalorder %s16, 0
      %p83 = por %p81, %p82
      %p84 = scmp.ne.s32.totalorder %s73, %s76
      %p85 = scmp.eq.s32.totalorder %s21, 1
      %p86 = por %p84, %p85
      %p87 = scmp.ne.s32.totalorder %s76, %s77
      %p88 = scmp.eq.s32.totalorder %s21, 0
      %p89 = por %p87, %p88
      %p90 = scmp.ne.s32.totalorder %s76, %s77
      %p91 = scmp.eq.s32.totalorder %s22, 1
      %p92 = por %p90, %p91
      %p94 = scmp.ne.s32.totalorder %s77, %s93
      %p95 = scmp.eq.s32.totalorder %s22, 0
      %p96 = por %p94, %p95
      %s97 = ssub.s32 %s16, %s23
      %p98 = scmp.eq.s32.totalorder %s97, 0
      %s100 = sadd.s32 %s99, 1
      %s101 = scalar_select %p98, %s99, %s100
      %p104 = pneg %p98
      %p105 = scmp.eq.s32.totalorder %s16, 1
      %p106 = por %p104, %p105
      %p107 = scmp.ne.s32.totalorder %s99, %s102
      %p108 = scmp.eq.s32.totalorder %s16, 0
      %p109 = por %p107, %p108
      %p110 = scmp.ne.s32.totalorder %s99, %s102
      %p111 = scmp.eq.s32.totalorder %s21, 1
      %p112 = por %p110, %p111
      %p113 = scmp.ne.s32.totalorder %s102, %s103
      %p114 = scmp.eq.s32.totalorder %s21, 0
      %p115 = por %p113, %p114
      %p116 = scmp.ne.s32.totalorder %s102, %s103
      %p117 = scmp.eq.s32.totalorder %s22, 1
      %p118 = por %p116, %p117
      %p120 = scmp.ne.s32.totalorder %s103, %s119
      %p121 = scmp.eq.s32.totalorder %s22, 0
      %p122 = por %p120, %p121
      %p123 = scmp.le.s32.totalorder 1, %s16
      %p124 = scmp.lt.s32.totalorder %s16, 3
      %p125 = pnand %p123, %p124
      %p126 = pneg %p125
      // Predicated region
      $region9: #{tpu_custom_call.1} parent=5 // pred_check
        _
      $region10: #{tpu_custom_call.1} parent=5 // pred_check_branch
        %128 = sbr.rel (%p125) target = $region12
      $region11: #{tpu_custom_call.1} parent=5 // pred_region
        %s129 = ssub.s32 %s16, 1
        // Predicated region
        $region13: #{tpu_custom_call.1} parent=11 // pred_check
          %p130 = pneg %p37
        $region14: #{tpu_custom_call.1} parent=11 // pred_check_branch
          %132 = sbr.rel (%p130) target = $region16
        $region15: #{tpu_custom_call.1} parent=11 // pred_region
          %s134 = ssub.s32 4096, 4096
          %135 = vsyncadd [#allocation3], %s134
          %s136 = sshll.u32 [#allocation2], 4
          %s137 = int_to_ptr.vmem [resolvable:$true] %s136
          %142 = dma.hbm_to_vmem [thread:$0]  %s0, 4096, %s137, [#allocation3], 512, 512, 32
        $region16: #{tpu_custom_call.1} parent=11 // pred_fallthru
          _
      $region12: #{tpu_custom_call.1} parent=5 // pred_fallthru
        _
      %p143 = scmp.lt.s32.totalorder %s16, 2
      // Predicated region
      $region17: #{tpu_custom_call.1} parent=5 // pred_check
        %p144 = pneg %p143
      $region18: #{tpu_custom_call.1} parent=5 // pred_check_branch
        %146 = sbr.rel (%p144) target = $region20
      $region19: #{tpu_custom_call.1} parent=5 // pred_region
        // Predicated region
        $region21: #{tpu_custom_call.1} parent=19 // pred_check
          %p147 = pneg %p57
        $region22: #{tpu_custom_call.1} parent=19 // pred_check_branch
          %149 = sbr.rel (%p147) target = $region24
        $region23: #{tpu_custom_call.1} parent=19 // pred_region
          %s150 = sand.u32 %s16, 1
          %s151 = scalar_lea.sflag [#allocation6], %s150
          %s152 = sand.u32 %s47, 1
          %s153 = smul.addr %s152, 1024
          %s154 = scalar_lea.vmem [#allocation5], %s153
          %s155 = smul.u32 2, %s16
          %s157 = ssub.s32 16384, 16384
          %158 = vsyncadd %s151, %s157
          %s159 = smul.addr %s155, 128
          %s160 = scalar_lea.hbm %s1, %s159
          %s161 = sshll.u32 %s154, 4
          %s162 = int_to_ptr.vmem [resolvable:$true] %s161
          %167 = dma.hbm_to_vmem [thread:$0]  %s160, 16384, %s162, %s151, 512, 256, 16
        $region24: #{tpu_custom_call.1} parent=19 // pred_fallthru
          _
        // Predicated region
        $region25: #{tpu_custom_call.1} parent=19 // pred_check
          %p168 = pneg %p83
        $region26: #{tpu_custom_call.1} parent=19 // pred_check_branch
          %170 = sbr.rel (%p168) target = $region28
        $region27: #{tpu_custom_call.1} parent=19 // pred_region
          %s171 = sand.u32 %s16, 1
          %s172 = scalar_lea.sflag [#allocation6], %s171
          %s173 = sand.u32 %s73, 1
          %s174 = smul.addr %s173, 8
          %s175 = scalar_lea.vmem [#allocation7], %s174
          %s176 = smul.u32 2, %s16
          %s178 = ssub.s32 128, 128
          %179 = vsyncadd %s172, %s178
          %s180 = smul.addr %s176, 64
          %s181 = scalar_lea.hbm %s2, %s180
          %s183 = sshll.u32 %s175, 4
          %s184 = int_to_ptr.vmem [resolvable:$true] %s183
          %186 = dma.hbm_to_vmem [thread:$0]  %s181, 128, %s184, %s172
        $region28: #{tpu_custom_call.1} parent=19 // pred_fallthru
          _
      $region20: #{tpu_custom_call.1} parent=5 // pred_fallthru
        _
      %p187 = scmp.le.s32.totalorder 1, %s16
      %p188 = scmp.lt.s32.totalorder %s16, 3
      %p189 = pnand %p187, %p188
      %p190 = pneg %p189
      // Predicated region
      $region29: #{tpu_custom_call.1} parent=5 // pred_check
        _
      $region30: #{tpu_custom_call.1} parent=5 // pred_check_branch
        %192 = sbr.rel (%p189) target = $region32
      $region31: #{tpu_custom_call.1} parent=5 // pred_region
        %s193 = ssub.s32 %s16, 1
        // Predicated region
        $region33: #{tpu_custom_call.1} parent=31 // pred_check
          %p194 = pneg %p37
        $region34: #{tpu_custom_call.1} parent=31 // pred_check_branch
          %196 = sbr.rel (%p194) target = $region36
        $region35: #{tpu_custom_call.1} parent=31 // pred_region
          %197 = dma.done [#allocation3], 4096
        $region36: #{tpu_custom_call.1} parent=31 // pred_fallthru
          _
        %s198 = sand.u32 %s21, 1
        %s199 = scalar_lea.sflag [#allocation6], %s198
        %s200 = sand.u32 %s50, 1
        %s201 = smul.addr %s200, 1024
        %s202 = scalar_lea.vmem [#allocation5], %s201
        // Predicated region
        $region37: #{tpu_custom_call.1} parent=31 // pred_check
          %p203 = pneg %p63
        $region38: #{tpu_custom_call.1} parent=31 // pred_check_branch
          %205 = sbr.rel (%p203) target = $region40
        $region39: #{tpu_custom_call.1} parent=31 // pred_region
          %206 = dma.done %s199, 16384
        $region40: #{tpu_custom_call.1} parent=31 // pred_fallthru
          _
        %s207 = sand.u32 %s21, 1
        %s208 = scalar_lea.sflag [#allocation6], %s207
        %s209 = sand.u32 %s76, 1
        %s210 = smul.addr %s209, 8
        %s211 = scalar_lea.vmem [#allocation7], %s210
        // Predicated region
        $region41: #{tpu_custom_call.1} parent=31 // pred_check
          %p212 = pneg %p89
        $region42: #{tpu_custom_call.1} parent=31 // pred_check_branch
          %214 = sbr.rel (%p212) target = $region44
        $region43: #{tpu_custom_call.1} parent=31 // pred_region
          %215 = dma.done %s208, 128
        $region44: #{tpu_custom_call.1} parent=31 // pred_fallthru
          _
        %p216 = pneg %p37
        %p217 = pneg %p34
        %s218 = sand.u32 %s21, 1
        %s219 = scalar_lea.sflag [#allocation6], %s218
        %s220 = sand.u32 %s50, 1
        %s221 = smul.addr %s220, 1024
        %s222 = scalar_lea.vmem [#allocation5], %s221
        %p223 = pneg %p63
        %p224 = pneg %p60
        %s225 = sand.u32 %s21, 1
        %s226 = scalar_lea.sflag [#allocation6], %s225
        %s227 = sand.u32 %s76, 1
        %s228 = smul.addr %s227, 8
        %s229 = scalar_lea.vmem [#allocation7], %s228
        %p230 = pneg %p89
        %p231 = pneg %p86
        %p232 = pneg %p115
        %p233 = pneg %p112
        %s234 = sand.u32 %s102, 1
        %s235 = scalar_lea.sflag [#allocation4], %s234
        %s236 = sand.u32 %s102, 1
        %s237 = smul.addr %s236, 128
        %s238 = scalar_lea.vmem [#allocation8], %s237
        %s239 = smul.u32 2, %s21
        %s240 = smul.u32 2, %s21
        %s241 = smul.u32 2, %s21
        %v242 = vld [vmem:[#allocation2] sm:$0xff]
        %v243 = vld [vmem:[#allocation2 + $0x8] sm:$0xff]
        %v244 = vld [vmem:[#allocation2 + $0x10] sm:$0xff]
        %v245 = vld [vmem:[#allocation2 + $0x18] sm:$0xff]
        %v246 = vld [vmem:[#allocation2 + $0x20] sm:$0xff]
        %v247 = vld [vmem:[#allocation2 + $0x28] sm:$0xff]
        %v248 = vld [vmem:[#allocation2 + $0x30] sm:$0xff]
        %v249 = vld [vmem:[#allocation2 + $0x38] sm:$0xff]
        %v250 = vld [vmem:[#allocation2 + $0x40] sm:$0xff]
        %v251 = vld [vmem:[#allocation2 + $0x48] sm:$0xff]
        %v252 = vld [vmem:[#allocation2 + $0x50] sm:$0xff]
        %v253 = vld [vmem:[#allocation2 + $0x58] sm:$0xff]
        %v254 = vld [vmem:[#allocation2 + $0x60] sm:$0xff]
        %v255 = vld [vmem:[#allocation2 + $0x68] sm:$0xff]
        %v256 = vld [vmem:[#allocation2 + $0x70] sm:$0xff]
        %v257 = vld [vmem:[#allocation2 + $0x78] sm:$0xff]
        %v258 = vld [vmem:[#allocation2 + $0x80] sm:$0xff]
        %v259 = vld [vmem:[#allocation2 + $0x88] sm:$0xff]
        %v260 = vld [vmem:[#allocation2 + $0x90] sm:$0xff]
        %v261 = vld [vmem:[#allocation2 + $0x98] sm:$0xff]
        %v262 = vld [vmem:[#allocation2 + $0xa0] sm:$0xff]
        %v263 = vld [vmem:[#allocation2 + $0xa8] sm:$0xff]
        %v264 = vld [vmem:[#allocation2 + $0xb0] sm:$0xff]
        %v265 = vld [vmem:[#allocation2 + $0xb8] sm:$0xff]
        %v266 = vld [vmem:[#allocation2 + $0xc0] sm:$0xff]
        %v267 = vld [vmem:[#allocation2 + $0xc8] sm:$0xff]
        %v268 = vld [vmem:[#allocation2 + $0xd0] sm:$0xff]
        %v269 = vld [vmem:[#allocation2 + $0xd8] sm:$0xff]
        %v270 = vld [vmem:[#allocation2 + $0xe0] sm:$0xff]
        %v271 = vld [vmem:[#allocation2 + $0xe8] sm:$0xff]
        %v272 = vld [vmem:[#allocation2 + $0xf0] sm:$0xff]
        %v273 = vld [vmem:[#allocation2 + $0xf8] sm:$0xff]
        %v274 = vld [vmem:[%s202] sm:$0xff]
        %v275 = vld [vmem:[%s202 + $0x8] sm:$0xff]
        %v276 = vld [vmem:[%s202 + $0x10] sm:$0xff]
        %v277 = vld [vmem:[%s202 + $0x18] sm:$0xff]
        %v278 = vld [vmem:[%s202 + $0x20] sm:$0xff]
        %v279 = vld [vmem:[%s202 + $0x28] sm:$0xff]
        %v280 = vld [vmem:[%s202 + $0x30] sm:$0xff]
        %v281 = vld [vmem:[%s202 + $0x38] sm:$0xff]
        %v282 = vld [vmem:[%s202 + $0x40] sm:$0xff]
        %v283 = vld [vmem:[%s202 + $0x48] sm:$0xff]
        %v284 = vld [vmem:[%s202 + $0x50] sm:$0xff]
        %v285 = vld [vmem:[%s202 + $0x58] sm:$0xff]
        %v286 = vld [vmem:[%s202 + $0x60] sm:$0xff]
        %v287 = vld [vmem:[%s202 + $0x68] sm:$0xff]
        %v288 = vld [vmem:[%s202 + $0x70] sm:$0xff]
        %v289 = vld [vmem:[%s202 + $0x78] sm:$0xff]
        %v290 = vld [vmem:[%s202 + $0x80] sm:$0xff]
        %v291 = vld [vmem:[%s202 + $0x88] sm:$0xff]
        %v292 = vld [vmem:[%s202 + $0x90] sm:$0xff]
        %v293 = vld [vmem:[%s202 + $0x98] sm:$0xff]
        %v294 = vld [vmem:[%s202 + $0xa0] sm:$0xff]
        %v295 = vld [vmem:[%s202 + $0xa8] sm:$0xff]
        %v296 = vld [vmem:[%s202 + $0xb0] sm:$0xff]
        %v297 = vld [vmem:[%s202 + $0xb8] sm:$0xff]
        %v298 = vld [vmem:[%s202 + $0xc0] sm:$0xff]
        %v299 = vld [vmem:[%s202 + $0xc8] sm:$0xff]
        %v300 = vld [vmem:[%s202 + $0xd0] sm:$0xff]
        %v301 = vld [vmem:[%s202 + $0xd8] sm:$0xff]
        %v302 = vld [vmem:[%s202 + $0xe0] sm:$0xff]
        %v303 = vld [vmem:[%s202 + $0xe8] sm:$0xff]
        %v304 = vld [vmem:[%s202 + $0xf0] sm:$0xff]
        %v305 = vld [vmem:[%s202 + $0xf8] sm:$0xff]
        %v306 = vld [vmem:[%s202 + $0x100] sm:$0xff]
        %v307 = vld [vmem:[%s202 + $0x108] sm:$0xff]
        %v308 = vld [vmem:[%s202 + $0x110] sm:$0xff]
        %v309 = vld [vmem:[%s202 + $0x118] sm:$0xff]
        %v310 = vld [vmem:[%s202 + $0x120] sm:$0xff]
        %v311 = vld [vmem:[%s202 + $0x128] sm:$0xff]
        %v312 = vld [vmem:[%s202 + $0x130] sm:$0xff]
        %v313 = vld [vmem:[%s202 + $0x138] sm:$0xff]
        %v314 = vld [vmem:[%s202 + $0x140] sm:$0xff]
        %v315 = vld [vmem:[%s202 + $0x148] sm:$0xff]
        %v316 = vld [vmem:[%s202 + $0x150] sm:$0xff]
        %v317 = vld [vmem:[%s202 + $0x158] sm:$0xff]
        %v318 = vld [vmem:[%s202 + $0x160] sm:$0xff]
        %v319 = vld [vmem:[%s202 + $0x168] sm:$0xff]
        %v320 = vld [vmem:[%s202 + $0x170] sm:$0xff]
        %v321 = vld [vmem:[%s202 + $0x178] sm:$0xff]
        %v322 = vld [vmem:[%s202 + $0x180] sm:$0xff]
        %v323 = vld [vmem:[%s202 + $0x188] sm:$0xff]
        %v324 = vld [vmem:[%s202 + $0x190] sm:$0xff]
        %v325 = vld [vmem:[%s202 + $0x198] sm:$0xff]
        %v326 = vld [vmem:[%s202 + $0x1a0] sm:$0xff]
        %v327 = vld [vmem:[%s202 + $0x1a8] sm:$0xff]
        %v328 = vld [vmem:[%s202 + $0x1b0] sm:$0xff]
        %v329 = vld [vmem:[%s202 + $0x1b8] sm:$0xff]
        %v330 = vld [vmem:[%s202 + $0x1c0] sm:$0xff]
        %v331 = vld [vmem:[%s202 + $0x1c8] sm:$0xff]
        %v332 = vld [vmem:[%s202 + $0x1d0] sm:$0xff]
        %v333 = vld [vmem:[%s202 + $0x1d8] sm:$0xff]
        %v334 = vld [vmem:[%s202 + $0x1e0] sm:$0xff]
        %v335 = vld [vmem:[%s202 + $0x1e8] sm:$0xff]
        %v336 = vld [vmem:[%s202 + $0x1f0] sm:$0xff]
        %v337 = vld [vmem:[%s202 + $0x1f8] sm:$0xff]
        %v338 = vld [vmem:[%s202 + $0x200] sm:$0xff]
        %v339 = vld [vmem:[%s202 + $0x208] sm:$0xff]
        %v340 = vld [vmem:[%s202 + $0x210] sm:$0xff]
        %v341 = vld [vmem:[%s202 + $0x218] sm:$0xff]
        %v342 = vld [vmem:[%s202 + $0x220] sm:$0xff]
        %v343 = vld [vmem:[%s202 + $0x228] sm:$0xff]
        %v344 = vld [vmem:[%s202 + $0x230] sm:$0xff]
        %v345 = vld [vmem:[%s202 + $0x238] sm:$0xff]
        %v346 = vld [vmem:[%s202 + $0x240] sm:$0xff]
        %v347 = vld [vmem:[%s202 + $0x248] sm:$0xff]
        %v348 = vld [vmem:[%s202 + $0x250] sm:$0xff]
        %v349 = vld [vmem:[%s202 + $0x258] sm:$0xff]
        %v350 = vld [vmem:[%s202 + $0x260] sm:$0xff]
        %v351 = vld [vmem:[%s202 + $0x268] sm:$0xff]
        %v352 = vld [vmem:[%s202 + $0x270] sm:$0xff]
        %v353 = vld [vmem:[%s202 + $0x278] sm:$0xff]
        %v354 = vld [vmem:[%s202 + $0x280] sm:$0xff]
        %v355 = vld [vmem:[%s202 + $0x288] sm:$0xff]
        %v356 = vld [vmem:[%s202 + $0x290] sm:$0xff]
        %v357 = vld [vmem:[%s202 + $0x298] sm:$0xff]
        %v358 = vld [vmem:[%s202 + $0x2a0] sm:$0xff]
        %v359 = vld [vmem:[%s202 + $0x2a8] sm:$0xff]
        %v360 = vld [vmem:[%s202 + $0x2b0] sm:$0xff]
        %v361 = vld [vmem:[%s202 + $0x2b8] sm:$0xff]
        %v362 = vld [vmem:[%s202 + $0x2c0] sm:$0xff]
        %v363 = vld [vmem:[%s202 + $0x2c8] sm:$0xff]
        %v364 = vld [vmem:[%s202 + $0x2d0] sm:$0xff]
        %v365 = vld [vmem:[%s202 + $0x2d8] sm:$0xff]
        %v366 = vld [vmem:[%s202 + $0x2e0] sm:$0xff]
        %v367 = vld [vmem:[%s202 + $0x2e8] sm:$0xff]
        %v368 = vld [vmem:[%s202 + $0x2f0] sm:$0xff]
        %v369 = vld [vmem:[%s202 + $0x2f8] sm:$0xff]
        %v370 = vld [vmem:[%s202 + $0x300] sm:$0xff]
        %v371 = vld [vmem:[%s202 + $0x308] sm:$0xff]
        %v372 = vld [vmem:[%s202 + $0x310] sm:$0xff]
        %v373 = vld [vmem:[%s202 + $0x318] sm:$0xff]
        %v374 = vld [vmem:[%s202 + $0x320] sm:$0xff]
        %v375 = vld [vmem:[%s202 + $0x328] sm:$0xff]
        %v376 = vld [vmem:[%s202 + $0x330] sm:$0xff]
        %v377 = vld [vmem:[%s202 + $0x338] sm:$0xff]
        %v378 = vld [vmem:[%s202 + $0x340] sm:$0xff]
        %v379 = vld [vmem:[%s202 + $0x348] sm:$0xff]
        %v380 = vld [vmem:[%s202 + $0x350] sm:$0xff]
        %v381 = vld [vmem:[%s202 + $0x358] sm:$0xff]
        %v382 = vld [vmem:[%s202 + $0x360] sm:$0xff]
        %v383 = vld [vmem:[%s202 + $0x368] sm:$0xff]
        %v384 = vld [vmem:[%s202 + $0x370] sm:$0xff]
        %v385 = vld [vmem:[%s202 + $0x378] sm:$0xff]
        %v386 = vld [vmem:[%s202 + $0x380] sm:$0xff]
        %v387 = vld [vmem:[%s202 + $0x388] sm:$0xff]
        %v388 = vld [vmem:[%s202 + $0x390] sm:$0xff]
        %v389 = vld [vmem:[%s202 + $0x398] sm:$0xff]
        %v390 = vld [vmem:[%s202 + $0x3a0] sm:$0xff]
        %v391 = vld [vmem:[%s202 + $0x3a8] sm:$0xff]
        %v392 = vld [vmem:[%s202 + $0x3b0] sm:$0xff]
        %v393 = vld [vmem:[%s202 + $0x3b8] sm:$0xff]
        %v394 = vld [vmem:[%s202 + $0x3c0] sm:$0xff]
        %v395 = vld [vmem:[%s202 + $0x3c8] sm:$0xff]
        %v396 = vld [vmem:[%s202 + $0x3d0] sm:$0xff]
        %v397 = vld [vmem:[%s202 + $0x3d8] sm:$0xff]
        %v398 = vld [vmem:[%s202 + $0x3e0] sm:$0xff]
        %v399 = vld [vmem:[%s202 + $0x3e8] sm:$0xff]
        %v400 = vld [vmem:[%s202 + $0x3f0] sm:$0xff]
        %v401 = vld [vmem:[%s202 + $0x3f8] sm:$0xff]
        %v402 = vld [vmem:[%s211] sm:$0x77]
        %v404 = vlaneseq
        %v405 = vshrl.u32 %v404, 7
        %v406 = vsub.s32 0, %v405
        %v407 = vrot.slane %v402, %v406
        %v408 = vlaneseq
        %v409 = vshrl.u32 %v408, 7
        %v410 = vsub.s32 4, %v409
        %v411 = vrot.slane %v402, %v410
        %v414 = vlaneseq
        %v415 = vshrl.u32 %v414, 7
        %v416 = vsub.s32 0, %v415
        %v417 = vrot.slane %v407, %v416
        %v418 = vlaneseq
        %v419 = vshrl.u32 %v418, 7
        %v420 = vsub.s32 0, %v419
        %v421 = vrot.slane %v411, %v420
        %422 = vmatprep.subr.mxu0 %v275
        %423 = vmatpush1.msra.mxu0 %v274
        %424 = vmatprep.subr.mxu0 %v277
        %425 = vmatpush1.msra.mxu0 %v276
        %426 = vmatprep.subr.mxu0 %v279
        %427 = vmatpush1.msra.mxu0 %v278
        %428 = vmatprep.subr.mxu0 %v281
        %429 = vmatpush1.msra.mxu0 %v280
        %430 = vmatprep.subr.mxu0 %v283
        %431 = vmatpush1.msra.mxu0 %v282
        %432 = vmatprep.subr.mxu0 %v285
        %433 = vmatpush1.msra.mxu0 %v284
        %434 = vmatprep.subr.mxu0 %v287
        %435 = vmatpush1.msra.mxu0 %v286
        %436 = vmatprep.subr.mxu0 %v289
        %437 = vmatpush1.msra.mxu0 %v288
        %438 = vmatprep.subr.mxu0 %v291
        %439 = vmatpush1.msra.mxu0 %v290
        %440 = vmatprep.subr.mxu0 %v293
        %441 = vmatpush1.msra.mxu0 %v292
        %442 = vmatprep.subr.mxu0 %v295
        %443 = vmatpush1.msra.mxu0 %v294
        %444 = vmatprep.subr.mxu0 %v297
        %445 = vmatpush1.msra.mxu0 %v296
        %446 = vmatprep.subr.mxu0 %v299
        %447 = vmatpush1.msra.mxu0 %v298
        %448 = vmatprep.subr.mxu0 %v301
        %449 = vmatpush1.msra.mxu0 %v300
        %450 = vmatprep.subr.mxu0 %v303
        %451 = vmatpush1.msra.mxu0 %v302
        %452 = vmatprep.subr.mxu0 %v305
        %453 = vmatpush1.msra.mxu0 %v304
        %454 = vmatprep.subr.mxu0 %v307
        %455 = vmatpush1.msra.mxu0 %v306
        %456 = vmatprep.subr.mxu0 %v309
        %457 = vmatpush1.msra.mxu0 %v308
        %458 = vmatprep.subr.mxu0 %v311
        %459 = vmatpush1.msra.mxu0 %v310
        %460 = vmatprep.subr.mxu0 %v313
        %461 = vmatpush1.msra.mxu0 %v312
        %462 = vmatprep.subr.mxu0 %v315
        %463 = vmatpush1.msra.mxu0 %v314
        %464 = vmatprep.subr.mxu0 %v317
        %465 = vmatpush1.msra.mxu0 %v316
        %466 = vmatprep.subr.mxu0 %v319
        %467 = vmatpush1.msra.mxu0 %v318
        %468 = vmatprep.subr.mxu0 %v321
        %469 = vmatpush1.msra.mxu0 %v320
        %470 = vmatprep.subr.mxu0 %v323
        %471 = vmatpush1.msra.mxu0 %v322
        %472 = vmatprep.subr.mxu0 %v325
        %473 = vmatpush1.msra.mxu0 %v324
        %474 = vmatprep.subr.mxu0 %v327
        %475 = vmatpush1.msra.mxu0 %v326
        %476 = vmatprep.subr.mxu0 %v329
        %477 = vmatpush1.msra.mxu0 %v328
        %478 = vmatprep.subr.mxu0 %v331
        %479 = vmatpush1.msra.mxu0 %v330
        %480 = vmatprep.subr.mxu0 %v333
        %481 = vmatpush1.msra.mxu0 %v332
        %482 = vmatprep.subr.mxu0 %v335
        %483 = vmatpush1.msra.mxu0 %v334
        %484 = vmatprep.subr.mxu0 %v337
        %485 = vmatpush1.msra.mxu0 %v336
        %486 = vmatprep.mubr.f32.mxu0 %v243
        %487 = vmatmul.mubr.f32.gmra.mrb[0].mxu0 %v242
        %v488 = vpop.f32.mrb[0].mxu0
        %v489 = vadd.f32 %v417, %v488
        %v490 = vpop.f32.mrb[0].mxu0
        %v491 = vadd.f32 %v421, %v490
        %492 = vmatprep.mubr.f32.mxu0 %v247
        %493 = vmatmul.mubr.f32.gmra.mrb[0].mxu0 %v246
        %v494 = vpop.f32.mrb[0].mxu0
        %v495 = vadd.f32 %v417, %v494
        %v496 = vpop.f32.mrb[0].mxu0
        %v497 = vadd.f32 %v421, %v496
        %498 = vmatprep.mubr.f32.mxu0 %v251
        %499 = vmatmul.mubr.f32.gmra.mrb[0].mxu0 %v250
        %v500 = vpop.f32.mrb[0].mxu0
        %v501 = vadd.f32 %v417, %v500
        %v502 = vpop.f32.mrb[0].mxu0
        %v503 = vadd.f32 %v421, %v502
        %504 = vmatprep.mubr.f32.mxu0 %v255
        %505 = vmatmul.mubr.f32.gmra.mrb[0].mxu0 %v254
        %v506 = vpop.f32.mrb[0].mxu0
        %v507 = vadd.f32 %v417, %v506
        %v508 = vpop.f32.mrb[0].mxu0
        %v509 = vadd.f32 %v421, %v508
        %510 = vmatprep.mubr.f32.mxu0 %v259
        %511 = vmatmul.mubr.f32.gmra.mrb[0].mxu0 %v258
        %v512 = vpop.f32.mrb[0].mxu0
        %v513 = vadd.f32 %v417, %v512
        %v514 = vpop.f32.mrb[0].mxu0
        %v515 = vadd.f32 %v421, %v514
        %516 = vmatprep.mubr.f32.mxu0 %v263
        %517 = vmatmul.mubr.f32.gmra.mrb[0].mxu0 %v262
        %v518 = vpop.f32.mrb[0].mxu0
        %v519 = vadd.f32 %v417, %v518
        %v520 = vpop.f32.mrb[0].mxu0
        %v521 = vadd.f32 %v421, %v520
        %522 = vmatprep.mubr.f32.mxu0 %v267
        %523 = vmatmul.mubr.f32.gmra.mrb[0].mxu0 %v266
        %v524 = vpop.f32.mrb[0].mxu0
        %v525 = vadd.f32 %v417, %v524
        %v526 = vpop.f32.mrb[0].mxu0
        %v527 = vadd.f32 %v421, %v526
        %528 = vmatprep.mubr.f32.mxu0 %v271
        %529 = vmatmul.mubr.f32.gmra.mrb[0].mxu0 %v270
        %v530 = vpop.f32.mrb[0].mxu0
        %v531 = vadd.f32 %v417, %v530
        %v532 = vpop.f32.mrb[0].mxu0
        %v533 = vadd.f32 %v421, %v532
        %534 = vdwg.mxu0
        %535 = vmatprep.subr.mxu0 %v339
        %536 = vmatpush1.msra.mxu0 %v338
        %537 = vmatprep.subr.mxu0 %v341
        %538 = vmatpush1.msra.mxu0 %v340
        %539 = vmatprep.subr.mxu0 %v343
        %540 = vmatpush1.msra.mxu0 %v342
        %541 = vmatprep.subr.mxu0 %v345
        %542 = vmatpush1.msra.mxu0 %v344
        %543 = vmatprep.subr.mxu0 %v347
        %544 = vmatpush1.msra.mxu0 %v346
        %545 = vmatprep.subr.mxu0 %v349
        %546 = vmatpush1.msra.mxu0 %v348
        %547 = vmatprep.subr.mxu0 %v351
        %548 = vmatpush1.msra.mxu0 %v350
        %549 = vmatprep.subr.mxu0 %v353
        %550 = vmatpush1.msra.mxu0 %v352
        %551 = vmatprep.subr.mxu0 %v355
        %552 = vmatpush1.msra.mxu0 %v354
        %553 = vmatprep.subr.mxu0 %v357
        %554 = vmatpush1.msra.mxu0 %v356
        %555 = vmatprep.subr.mxu0 %v359
        %556 = vmatpush1.msra.mxu0 %v358
        %557 = vmatprep.subr.mxu0 %v361
        %558 = vmatpush1.msra.mxu0 %v360
        %559 = vmatprep.subr.mxu0 %v363
        %560 = vmatpush1.msra.mxu0 %v362
        %561 = vmatprep.subr.mxu0 %v365
        %562 = vmatpush1.msra.mxu0 %v364
        %563 = vmatprep.subr.mxu0 %v367
        %564 = vmatpush1.msra.mxu0 %v366
        %565 = vmatprep.subr.mxu0 %v369
        %566 = vmatpush1.msra.mxu0 %v368
        %567 = vmatprep.subr.mxu0 %v371
        %568 = vmatpush1.msra.mxu0 %v370
        %569 = vmatprep.subr.mxu0 %v373
        %570 = vmatpush1.msra.mxu0 %v372
        %571 = vmatprep.subr.mxu0 %v375
        %572 = vmatpush1.msra.mxu0 %v374
        %573 = vmatprep.subr.mxu0 %v377
        %574 = vmatpush1.msra.mxu0 %v376
        %575 = vmatprep.subr.mxu0 %v379
        %576 = vmatpush1.msra.mxu0 %v378
        %577 = vmatprep.subr.mxu0 %v381
        %578 = vmatpush1.msra.mxu0 %v380
        %579 = vmatprep.subr.mxu0 %v383
        %580 = vmatpush1.msra.mxu0 %v382
        %581 = vmatprep.subr.mxu0 %v385
        %582 = vmatpush1.msra.mxu0 %v384
        %583 = vmatprep.subr.mxu0 %v387
        %584 = vmatpush1.msra.mxu0 %v386
        %585 = vmatprep.subr.mxu0 %v389
        %586 = vmatpush1.msra.mxu0 %v388
        %587 = vmatprep.subr.mxu0 %v391
        %588 = vmatpush1.msra.mxu0 %v390
        %589 = vmatprep.subr.mxu0 %v393
        %590 = vmatpush1.msra.mxu0 %v392
        %591 = vmatprep.subr.mxu0 %v395
        %592 = vmatpush1.msra.mxu0 %v394
        %593 = vmatprep.subr.mxu0 %v397
        %594 = vmatpush1.msra.mxu0 %v396
        %595 = vmatprep.subr.mxu0 %v399
        %596 = vmatpush1.msra.mxu0 %v398
        %597 = vmatprep.subr.mxu0 %v401
        %598 = vmatpush1.msra.mxu0 %v400
        %599 = vmatprep.mubr.f32.mxu0 %v245
        %600 = vmatmul.mubr.f32.gmra.mrb[0].mxu0 %v244
        %v601 = vpop.f32.mrb[0].mxu0
        %v602 = vadd.f32 %v489, %v601
        %v603 = vpop.f32.mrb[0].mxu0
        %v604 = vadd.f32 %v491, %v603
        %605 = vmatprep.mubr.f32.mxu0 %v249
        %606 = vmatmul.mubr.f32.gmra.mrb[0].mxu0 %v248
        %v607 = vpop.f32.mrb[0].mxu0
        %v608 = vadd.f32 %v495, %v607
        %v609 = vpop.f32.mrb[0].mxu0
        %v610 = vadd.f32 %v497, %v609
        %611 = vmatprep.mubr.f32.mxu0 %v253
        %612 = vmatmul.mubr.f32.gmra.mrb[0].mxu0 %v252
        %v613 = vpop.f32.mrb[0].mxu0
        %v614 = vadd.f32 %v501, %v613
        %v615 = vpop.f32.mrb[0].mxu0
        %v616 = vadd.f32 %v503, %v615
        %617 = vmatprep.mubr.f32.mxu0 %v257
        %618 = vmatmul.mubr.f32.gmra.mrb[0].mxu0 %v256
        %v619 = vpop.f32.mrb[0].mxu0
        %v620 = vadd.f32 %v507, %v619
        %v621 = vpop.f32.mrb[0].mxu0
        %v622 = vadd.f32 %v509, %v621
        %623 = vmatprep.mubr.f32.mxu0 %v261
        %624 = vmatmul.mubr.f32.gmra.mrb[0].mxu0 %v260
        %v625 = vpop.f32.mrb[0].mxu0
        %v626 = vadd.f32 %v513, %v625
        %v627 = vpop.f32.mrb[0].mxu0
        %v628 = vadd.f32 %v515, %v627
        %629 = vmatprep.mubr.f32.mxu0 %v265
        %630 = vmatmul.mubr.f32.gmra.mrb[0].mxu0 %v264
        %v631 = vpop.f32.mrb[0].mxu0
        %v632 = vadd.f32 %v519, %v631
        %v633 = vpop.f32.mrb[0].mxu0
        %v634 = vadd.f32 %v521, %v633
        %635 = vmatprep.mubr.f32.mxu0 %v269
        %636 = vmatmul.mubr.f32.gmra.mrb[0].mxu0 %v268
        %v637 = vpop.f32.mrb[0].mxu0
        %v638 = vadd.f32 %v525, %v637
        %v639 = vpop.f32.mrb[0].mxu0
        %v640 = vadd.f32 %v527, %v639
        %641 = vmatprep.mubr.f32.mxu0 %v273
        %642 = vmatmul.mubr.f32.gmra.mrb[0].mxu0 %v272
        %v643 = vpop.f32.mrb[0].mxu0
        %v644 = vadd.f32 %v531, %v643
        %v645 = vpop.f32.mrb[0].mxu0
        %v646 = vadd.f32 %v533, %v645
        %647 = vdwg.mxu0
        %v648 = vadd.f32 %v602, %v608
        %v649 = vadd.f32 %v648, %v614
        %v650 = vadd.f32 %v649, %v620
        %v651 = vadd.f32 %v650, %v626
        %v652 = vadd.f32 %v651, %v632
        %v653 = vadd.f32 %v652, %v638
        %v654 = vadd.f32 %v653, %v644
        %v655 = vrot.slane %v654, 4
        %v656 = vadd.f32 %v654, %v655
        %v657 = vrot.slane %v656, 2
        %v658 = vadd.f32 %v656, %v657
        %v659 = vrot.slane %v658, 1
        %v660 = vadd.f32 %v658, %v659
        %v661 = vadd.f32 %v604, %v610
        %v662 = vadd.f32 %v661, %v616
        %v663 = vadd.f32 %v662, %v622
        %v664 = vadd.f32 %v663, %v628
        %v665 = vadd.f32 %v664, %v634
        %v666 = vadd.f32 %v665, %v640
        %v667 = vadd.f32 %v666, %v646
        %v668 = vrot.slane %v667, 4
        %v669 = vadd.f32 %v667, %v668
        %v670 = vrot.slane %v669, 2
        %v671 = vadd.f32 %v669, %v670
        %v672 = vrot.slane %v671, 1
        %v673 = vadd.f32 %v671, %v672
        %v674 = vrcp.pop 64.0
        %v675 = vmul.f32 %v660, %v674
        %v676 = vmul.f32 %v673, %v674
        %v677 = vsub.f32 %v602, %v675
        %v678 = vsub.f32 %v604, %v676
        %v679 = vsub.f32 %v608, %v675
        %v680 = vsub.f32 %v610, %v676
        %v681 = vsub.f32 %v614, %v675
        %v682 = vsub.f32 %v616, %v676
        %v683 = vsub.f32 %v620, %v675
        %v684 = vsub.f32 %v622, %v676
        %v685 = vsub.f32 %v626, %v675
        %v686 = vsub.f32 %v628, %v676
        %v687 = vsub.f32 %v632, %v675
        %v688 = vsub.f32 %v634, %v676
        %v689 = vsub.f32 %v638, %v675
        %v690 = vsub.f32 %v640, %v676
        %v691 = vsub.f32 %v644, %v675
        %v692 = vsub.f32 %v646, %v676
        %v693 = vmul.f32 %v677, %v677
        %v694 = vmul.f32 %v678, %v678
        %v695 = vmul.f32 %v679, %v679
        %v696 = vmul.f32 %v680, %v680
        %v697 = vmul.f32 %v681, %v681
        %v698 = vmul.f32 %v682, %v682
        %v699 = vmul.f32 %v683, %v683
        %v700 = vmul.f32 %v684, %v684
        %v701 = vmul.f32 %v685, %v685
        %v702 = vmul.f32 %v686, %v686
        %v703 = vmul.f32 %v687, %v687
        %v704 = vmul.f32 %v688, %v688
        %v705 = vmul.f32 %v689, %v689
        %v706 = vmul.f32 %v690, %v690
        %v707 = vmul.f32 %v691, %v691
        %v708 = vmul.f32 %v692, %v692
        %v709 = vadd.f32 %v693, %v695
        %v710 = vadd.f32 %v709, %v697
        %v711 = vadd.f32 %v710, %v699
        %v712 = vadd.f32 %v711, %v701
        %v713 = vadd.f32 %v712, %v703
        %v714 = vadd.f32 %v713, %v705
        %v715 = vadd.f32 %v714, %v707
        %v716 = vrot.slane %v715, 4
        %v717 = vadd.f32 %v715, %v716
        %v718 = vrot.slane %v717, 2
        %v719 = vadd.f32 %v717, %v718
        %v720 = vrot.slane %v719, 1
        %v721 = vadd.f32 %v719, %v720
        %v722 = vadd.f32 %v694, %v696
        %v723 = vadd.f32 %v722, %v698
        %v724 = vadd.f32 %v723, %v700
        %v725 = vadd.f32 %v724, %v702
        %v726 = vadd.f32 %v725, %v704
        %v727 = vadd.f32 %v726, %v706
        %v728 = vadd.f32 %v727, %v708
        %v729 = vrot.slane %v728, 4
        %v730 = vadd.f32 %v728, %v729
        %v731 = vrot.slane %v730, 2
        %v732 = vadd.f32 %v730, %v731
        %v733 = vrot.slane %v732, 1
        %v734 = vadd.f32 %v732, %v733
        %v735 = vmul.f32 %v721, %v674
        %v736 = vmul.f32 %v734, %v674
        %v737 = vadd.f32 %v735, 1e-05
        %v738 = vadd.f32 %v736, 1e-05
        %v739 = vrsqrt.pop %v737
        %v740 = vrsqrt.pop %v738
        %v741 = vmul.f32 %v677, %v739
        %v742 = vmul.f32 %v678, %v740
        %v743 = vmul.f32 %v679, %v739
        %v744 = vmul.f32 %v680, %v740
        %v745 = vmul.f32 %v681, %v739
        %v746 = vmul.f32 %v682, %v740
        %v747 = vmul.f32 %v683, %v739
        %v748 = vmul.f32 %v684, %v740
        %v749 = vmul.f32 %v685, %v739
        %v750 = vmul.f32 %v686, %v740
        %v751 = vmul.f32 %v687, %v739
        %v752 = vmul.f32 %v688, %v740
        %v753 = vmul.f32 %v689, %v739
        %v754 = vmul.f32 %v690, %v740
        %v755 = vmul.f32 %v691, %v739
        %v756 = vmul.f32 %v692, %v740
        %v757 = vlaneseq
        %v758 = vshrl.u32 %v757, 7
        %v759 = vsub.s32 1, %v758
        %v760 = vrot.slane %v402, %v759
        %v761 = vlaneseq
        %v762 = vshrl.u32 %v761, 7
        %v763 = vsub.s32 5, %v762
        %v764 = vrot.slane %v402, %v763
        %v767 = vlaneseq
        %v768 = vshrl.u32 %v767, 7
        %v769 = vsub.s32 1, %v768
        %v770 = vrot.slane %v760, %v769
        %v771 = vlaneseq
        %v772 = vshrl.u32 %v771, 7
        %v773 = vsub.s32 1, %v772
        %v774 = vrot.slane %v764, %v773
        %v775 = vmul.f32 %v741, %v770
        %v776 = vmul.f32 %v742, %v774
        %v777 = vmul.f32 %v743, %v770
        %v778 = vmul.f32 %v744, %v774
        %v779 = vmul.f32 %v745, %v770
        %v780 = vmul.f32 %v746, %v774
        %v781 = vmul.f32 %v747, %v770
        %v782 = vmul.f32 %v748, %v774
        %v783 = vmul.f32 %v749, %v770
        %v784 = vmul.f32 %v750, %v774
        %v785 = vmul.f32 %v751, %v770
        %v786 = vmul.f32 %v752, %v774
        %v787 = vmul.f32 %v753, %v770
        %v788 = vmul.f32 %v754, %v774
        %v789 = vmul.f32 %v755, %v770
        %v790 = vmul.f32 %v756, %v774
        %v791 = vlaneseq
        %v792 = vshrl.u32 %v791, 7
        %v793 = vsub.s32 2, %v792
        %v794 = vrot.slane %v402, %v793
        %v795 = vlaneseq
        %v796 = vshrl.u32 %v795, 7
        %v797 = vsub.s32 6, %v796
        %v798 = vrot.slane %v402, %v797
        %v801 = vlaneseq
        %v802 = vshrl.u32 %v801, 7
        %v803 = vsub.s32 2, %v802
        %v804 = vrot.slane %v794, %v803
        %v805 = vlaneseq
        %v806 = vshrl.u32 %v805, 7
        %v807 = vsub.s32 2, %v806
        %v808 = vrot.slane %v798, %v807
        %v809 = vadd.f32 %v775, %v804
        %v810 = vadd.f32 %v776, %v808
        %v811 = vadd.f32 %v777, %v804
        %v812 = vadd.f32 %v778, %v808
        %v813 = vadd.f32 %v779, %v804
        %v814 = vadd.f32 %v780, %v808
        %v815 = vadd.f32 %v781, %v804
        %v816 = vadd.f32 %v782, %v808
        %v817 = vadd.f32 %v783, %v804
        %v818 = vadd.f32 %v784, %v808
        %v819 = vadd.f32 %v785, %v804
        %v820 = vadd.f32 %v786, %v808
        %v821 = vadd.f32 %v787, %v804
        %v822 = vadd.f32 %v788, %v808
        %v823 = vadd.f32 %v789, %v804
        %v824 = vadd.f32 %v790, %v808
        %v825 = vmax.f32 %v809, 0.0
        %v826 = vmax.f32 %v810, 0.0
        %v827 = vmax.f32 %v811, 0.0
        %v828 = vmax.f32 %v812, 0.0
        %v829 = vmax.f32 %v813, 0.0
        %v830 = vmax.f32 %v814, 0.0
        %v831 = vmax.f32 %v815, 0.0
        %v832 = vmax.f32 %v816, 0.0
        %v833 = vmax.f32 %v817, 0.0
        %v834 = vmax.f32 %v818, 0.0
        %v835 = vmax.f32 %v819, 0.0
        %v836 = vmax.f32 %v820, 0.0
        %v837 = vmax.f32 %v821, 0.0
        %v838 = vmax.f32 %v822, 0.0
        %v839 = vmax.f32 %v823, 0.0
        %v840 = vmax.f32 %v824, 0.0
        %841 = vst [vmem:[%s238] sm:$0xff] %v825
        %842 = vst [vmem:[%s238 + $0x8] sm:$0xff] %v826
        %843 = vst [vmem:[%s238 + $0x10] sm:$0xff] %v827
        %844 = vst [vmem:[%s238 + $0x18] sm:$0xff] %v828
        %845 = vst [vmem:[%s238 + $0x20] sm:$0xff] %v829
        %846 = vst [vmem:[%s238 + $0x28] sm:$0xff] %v830
        %847 = vst [vmem:[%s238 + $0x30] sm:$0xff] %v831
        %848 = vst [vmem:[%s238 + $0x38] sm:$0xff] %v832
        %849 = vst [vmem:[%s238 + $0x40] sm:$0xff] %v833
        %850 = vst [vmem:[%s238 + $0x48] sm:$0xff] %v834
        %851 = vst [vmem:[%s238 + $0x50] sm:$0xff] %v835
        %852 = vst [vmem:[%s238 + $0x58] sm:$0xff] %v836
        %853 = vst [vmem:[%s238 + $0x60] sm:$0xff] %v837
        %854 = vst [vmem:[%s238 + $0x68] sm:$0xff] %v838
        %855 = vst [vmem:[%s238 + $0x70] sm:$0xff] %v839
        %856 = vst [vmem:[%s238 + $0x78] sm:$0xff] %v840
        %s857 = sand.u32 %s102, 1
        %s858 = scalar_lea.sflag [#allocation4], %s857
        %s859 = sand.u32 %s102, 1
        %s860 = smul.addr %s859, 128
        %s861 = scalar_lea.vmem [#allocation8], %s860
        // Predicated region
        $region45: #{tpu_custom_call.1} parent=31 // pred_check
          %p862 = pneg %p112
        $region46: #{tpu_custom_call.1} parent=31 // pred_check_branch
          %864 = sbr.rel (%p862) target = $region48
        $region47: #{tpu_custom_call.1} parent=31 // pred_region
          %s865 = smul.u32 2, %s21
          %s867 = ssub.s32 2048, 2048
          %868 = vsyncadd %s858, %s867
          %s869 = smul.addr %s865, 128
          %s870 = scalar_lea.hbm %s3, %s869
          %s871 = sshll.u32 %s861, 4
          %s872 = int_to_ptr.vmem [resolvable:$true] %s871
          %877 = dma.vmem_to_hbm [thread:$0]  %s872, 2048, %s870, %s858, 256, 512, 16
        $region48: #{tpu_custom_call.1} parent=31 // pred_fallthru
          _
      $region32: #{tpu_custom_call.1} parent=5 // pred_fallthru
        _
      %p878 = scmp.le.s32.totalorder 2, %s16
      // Predicated region
      $region49: #{tpu_custom_call.1} parent=5 // pred_check
        %p879 = pneg %p878
      $region50: #{tpu_custom_call.1} parent=5 // pred_check_branch
        %881 = sbr.rel (%p879) target = $region52
      $region51: #{tpu_custom_call.1} parent=5 // pred_region
        %s882 = ssub.s32 %s16, 2
        // Predicated region
        $region53: #{tpu_custom_call.1} parent=51 // pred_check
          %p883 = pneg %p118
        $region54: #{tpu_custom_call.1} parent=51 // pred_check_branch
          %885 = sbr.rel (%p883) target = $region56
        $region55: #{tpu_custom_call.1} parent=51 // pred_region
          %s886 = sand.u32 %s103, 1
          %s887 = scalar_lea.sflag [#allocation4], %s886
          %s888 = sand.u32 %s103, 1
          %s889 = smul.addr %s888, 128
          %s890 = scalar_lea.vmem [#allocation8], %s889
          %891 = dma.done %s887, 2048
        $region56: #{tpu_custom_call.1} parent=51 // pred_fallthru
          _
      $region52: #{tpu_custom_call.1} parent=5 // pred_fallthru
        _
    $region6: #{tpu_custom_call.1} parent=1 // loop_footer
      %s20 = sadd.s32 1, %s16
    $region7: #{tpu_custom_call.1} parent=1 // loop_footer_branch
      %15 = sbr.rel target = $region3
    $region8: #{tpu_custom_call.1} parent=1 // loop_exit
      _
    %892 = vsyncpa [#allocation3], 1
    %s893 = scalar_lea.sflag [#allocation3], 1
    %894 = vsyncpa %s893, 1
    %895 = vsyncpa [#allocation6], 1
    %s896 = scalar_lea.sflag [#allocation6], 1
    %897 = vsyncpa %s896, 1
    %898 = vsyncpa [#allocation4], 1
    %s899 = scalar_lea.sflag [#allocation4], 1
    %900 = vsyncpa %s899, 1

</llo_original>
